<compile_context>
chip_gen: v6e
topology: v6e:2x2x1
jax: 0.10.0
libtpu: 0.0.40
codegen_flags: <defaults>
</compile_context>

<pallas_src>
import functools

import jax
import jax.numpy as jnp
from jax.experimental import pallas as pl
from jax.experimental.pallas import tpu as pltpu

LN_EPS = 1e-5
LANE = 128
SUBLANE = 8


def _round_up(x, m):
    return (x + m - 1) // m * m


def _chip_defaults():
    """(default row tile, vmem_limit_bytes) tuned per TPU generation."""
    try:
        vmem = pltpu.get_tpu_info().vmem_capacity_bytes
    except Exception:
        vmem = 64 * 1024 * 1024  # conservative (v7x-sized) fallback
    if vmem >= 128 * 1024 * 1024:            # v5e / v6e: 128 MiB physical VMEM
        return 1024, 100 * 1024 * 1024
    return 512, 48 * 1024 * 1024             # v7x: 64 MiB per TensorCore


def prepare_mlp_params(w1, b1, gamma, beta, w2, b2):
    """One-time parameter prep (padding + bf16 cast), hoisted out of the forward.

    w1: (in_dim, hidden)  w2: (hidden, out_dim)  (both pre-transposed for x @ W)
    b1/gamma/beta: (1, hidden) or (hidden,)      b2: (1, out_dim) or (out_dim,)
    Only the hidden dim is padded (to a lane multiple); padded columns are zero.
    """
    in_dim, hidden_dim = w1.shape
    out_dim = w2.shape[1]
    DH = _round_up(hidden_dim, LANE)

    w1p = w1.astype(jnp.bfloat16)
    w2p = w2.astype(jnp.bfloat16)
    if DH != hidden_dim:
        w1p = jnp.zeros((in_dim, DH), jnp.bfloat16).at[:, :hidden_dim].set(w1p)
        w2p = jnp.zeros((DH, out_dim), jnp.bfloat16).at[:hidden_dim, :].set(w2p)

    # b1 / gamma / beta packed into one (3, DH) f32 operand (rows: bias, gamma, beta).
    ln_p = jnp.zeros((3, DH), jnp.float32)
    ln_p = ln_p.at[0, :hidden_dim].set(jnp.reshape(b1, (-1,)).astype(jnp.float32))
    ln_p = ln_p.at[1, :hidden_dim].set(jnp.reshape(gamma, (-1,)).astype(jnp.float32))
    ln_p = ln_p.at[2, :hidden_dim].set(jnp.reshape(beta, (-1,)).astype(jnp.float32))

    b2p = jnp.reshape(b2, (1, out_dim)).astype(jnp.float32)
    return dict(w1=w1p, ln_params=ln_p, w2=w2p, b2=b2p, hidden_dim=hidden_dim)


def mlp_kernel(x_ref, w1_ref, p_ref, w2_ref, b2_ref, o_ref, *, hidden_dim):
    # x_ref: (TM, in_dim) f32 | w1: (in_dim, DH) bf16 | p: (3, DH) f32 (b1, gamma, beta)
    # w2: (DH, out_dim) bf16  | b2: (1, out_dim) f32  | o: (TM, out_dim) f32
    x = x_ref[...].astype(w1_ref.dtype)            # f32 -> bf16 cast in-kernel (VPU)

    # ---- Linear 1 (MXU, bf16 in / f32 accumulate) ----
    h = jnp.dot(x, w1_ref[...], preferred_element_type=jnp.float32) + p_ref[0:1, :]

    # ---- LayerNorm over the *real* hidden_dim (f32 statistics) ----
    # Padded hidden columns of h are exactly 0 (zero-padded w1 cols + zero bias),
    # so full-lane sums equal sums over the real columns; divide by true hidden_dim.
    inv_h = 1.0 / hidden_dim
    s1 = jnp.sum(h, axis=-1, keepdims=True)
    s2 = jnp.sum(h * h, axis=-1, keepdims=True)
    mean = s1 * inv_h
    var = jnp.maximum(s2 * inv_h - mean * mean, 0.0)   # clamp: one-pass cancellation
    hn = (h - mean) * jax.lax.rsqrt(var + LN_EPS)
    # gamma/beta zero-padded -> padded columns of hn return to exactly 0.
    hn = hn * p_ref[1:2, :] + p_ref[2:3, :]

    # ---- ReLU ----
    a = jnp.maximum(hn, 0.0)

    # ---- Linear 2 (MXU, bf16 in / f32 accumulate) ----
    o_ref[...] = (jnp.dot(a.astype(w2_ref.dtype), w2_ref[...],
                          preferred_element_type=jnp.float32)
                  + b2_ref[...]).astype(o_ref.dtype)


def mlp_forward(x, params, *, tm=None):
    """x: (N, in_dim) f32. params: output of prepare_mlp_params. Returns (N, out_dim) f32."""
    N, in_dim = x.shape
    w1 = params["w1"]
    ln_p = params["ln_params"]
    w2 = params["w2"]
    b2 = params["b2"]
    hidden_dim = params["hidden_dim"]
    DH = w1.shape[1]
    out_dim = w2.shape[1]

    default_tm, vmem_limit = _chip_defaults()
    if tm is None:
        tm = default_tm

    # Row tile: sublane-aligned, clamped to N, and capped so the grid has >= 2 steps
    # whenever N allows it (keeps pipelining alive and both v7x TensorCores busy).
    N8 = _round_up(N, SUBLANE)
    TM = min(_round_up(tm, SUBLANE), N8)
    if N8 >= 2 * SUBLANE:
        TM = min(TM, _round_up(pl.cdiv(N8, 2), SUBLANE))
    NP = _round_up(N, TM)

    # Only pad rows (zeros); row-padded outputs are finite and sliced off below.
    xp = x if NP == N else jnp.pad(x, ((0, NP - N), (0, 0)))

    kernel = functools.partial(mlp_kernel, hidden_dim=hidden_dim)
    resident = dict(pipeline_mode=pl.Buffered(1))   # constant blocks: no double buffer

    # NOTE: for very large hidden_dim (resident weights > ~1/3 of the VMEM limit),
    # add a second "arbitrary" grid axis that tiles DH and streams w1/w2 blocks
    # into a VMEM accumulator instead of keeping both weights fully resident.
    out_p = pl.pallas_call(
        kernel,
        out_shape=jax.ShapeDtypeStruct((NP, out_dim), jnp.float32),
        grid_spec=pltpu.PrefetchScalarGridSpec(
            num_scalar_prefetch=0,
            grid=(NP // TM,),
            in_specs=[
                pl.BlockSpec((TM, in_dim), lambda i: (i, 0)),             # x (pipelined)
                pl.BlockSpec((in_dim, DH), lambda i: (0, 0), **resident),  # w1
                pl.BlockSpec((3, DH), lambda i: (0, 0), **resident),       # b1/gamma/beta
                pl.BlockSpec((DH, out_dim), lambda i: (0, 0), **resident), # w2
                pl.BlockSpec((1, out_dim), lambda i: (0, 0), **resident),  # b2
            ],
            out_specs=pl.BlockSpec((TM, out_dim), lambda i: (i, 0)),
        ),
        compiler_params=pltpu.CompilerParams(
            dimension_semantics=("parallel",),   # shard row tiles over TCs (v7x)
            vmem_limit_bytes=vmem_limit,         # generation-aware scoped VMEM
        ),
    )(xp, w1, ln_p, w2, b2)

    # Strip row padding only; columns were never padded.
    return out_p[:N]


def kaiming_uniform(key, fan_in, shape, gain):
    # PyTorch kaiming_uniform_: bound = gain * sqrt(3 / fan_in)
    bound = gain * jnp.sqrt(3.0 / fan_in)
    return jax.random.uniform(key, shape, jnp.float32, -bound, bound)


def linear_bias(key, fan_in, shape):
    # PyTorch nn.Linear default bias init: U(-1/sqrt(fan_in), 1/sqrt(fan_in))
    bound = 1.0 / jnp.sqrt(fan_in)
    return jax.random.uniform(key, shape, jnp.float32, -bound, bound)


if __name__ == "__main__":
    in_dim, hidden_dim, out_dim = 16, 32, 8
    N = 8  # batch of rows

    key = jax.random.PRNGKey(0)
    kx, kw1, kb1, kw2, kb2 = jax.random.split(key, 5)

    x = jax.random.normal(kx, (N, in_dim), jnp.float32)

    relu_gain = jnp.sqrt(2.0)  # calculate_gain('relu')
    # Weights stored pre-transposed: (in_dim, hidden) so the kernel computes x @ W1.
    w1 = kaiming_uniform(kw1, in_dim, (in_dim, hidden_dim), relu_gain)
    b1 = linear_bias(kb1, in_dim, (1, hidden_dim))
    gamma = jnp.ones((1, hidden_dim), jnp.float32)   # LayerNorm affine defaults
    beta = jnp.zeros((1, hidden_dim), jnp.float32)
    w2 = kaiming_uniform(kw2, hidden_dim, (hidden_dim, out_dim), relu_gain)
    b2 = linear_bias(kb2, hidden_dim, (1, out_dim))

    # One-time parameter prep (padding + bf16 cast) -- hoisted out of the forward.
    params = prepare_mlp_params(w1, b1, gamma, beta, w2, b2)

    out = mlp_forward(x, params)
    out = jax.block_until_ready(out)
    assert out.shape == (N, out_dim)

    # Pure-JAX reference mirroring the kernel's bf16-matmul / f32-LN precision.
    # (bf16 matmuls are a design choice; a strict-f32 PyTorch parity check would
    #  need f32 MXU inputs at ~2x the HBM traffic.)
    hb = jnp.dot(x.astype(jnp.bfloat16), w1.astype(jnp.bfloat16),
                 preferred_element_type=jnp.float32) + b1
    mu = hb.mean(-1, keepdims=True)
    var = ((hb - mu) ** 2).mean(-1, keepdims=True)
    hn = (hb - mu) / jnp.sqrt(var + LN_EPS) * gamma + beta
    a = jnp.maximum(hn, 0.0)
    ref = jnp.dot(a.astype(jnp.bfloat16), w2.astype(jnp.bfloat16),
                  preferred_element_type=jnp.float32) + b2
    assert jnp.allclose(out, ref, atol=1e-2, rtol=1e-2), "mismatch vs reference"

    print("KERNEL_OK")
</pallas_src>

<mosaic_0001>
module attributes {stable_mosaic.version = 11 : i64} {
  func.func @mlp_kernel(%arg0: i32, %arg1: memref<8x16xf32, #tpu.memory_space<vmem>>, %arg2: memref<16x128xbf16, #tpu.memory_space<vmem>>, %arg3: memref<3x128xf32, #tpu.memory_space<vmem>>, %arg4: memref<128x8xbf16, #tpu.memory_space<vmem>>, %arg5: memref<1x8xf32, #tpu.memory_space<vmem>>, %arg6: memref<8x8xf32, #tpu.memory_space<vmem>>) attributes {dimension_semantics = [#tpu.dimension_semantics<parallel>], iteration_bounds = array<i64: 1>, scalar_prefetch = 0 : i64, scratch_operands = 0 : i64, tpu.core_type = #tpu.core_type<tc>, window_params = [{transform_indices = @transform_0, window_bounds = array<i64: 8, 16>}, {pipeline_mode = #tpu.pipeline_mode<synchronous>, transform_indices = @transform_1, window_bounds = array<i64: 16, 128>}, {pipeline_mode = #tpu.pipeline_mode<synchronous>, transform_indices = @transform_2, window_bounds = array<i64: 3, 128>}, {pipeline_mode = #tpu.pipeline_mode<synchronous>, transform_indices = @transform_3, window_bounds = array<i64: 128, 8>}, {pipeline_mode = #tpu.pipeline_mode<synchronous>, transform_indices = @transform_4, window_bounds = array<i64: 1, 8>}, {transform_indices = @transform_5, window_bounds = array<i64: 8, 8>}]} {
    %c0 = arith.constant 0 : index
    %c0_0 = arith.constant 0 : index
    %0 = vector.load %arg1[%c0, %c0_0] : memref<8x16xf32, #tpu.memory_space<vmem>>, vector<8x16xf32>
    %1 = arith.truncf %0 : vector<8x16xf32> to vector<8x16xbf16>
    %c0_1 = arith.constant 0 : index
    %c0_2 = arith.constant 0 : index
    %2 = vector.load %arg2[%c0_1, %c0_2] : memref<16x128xbf16, #tpu.memory_space<vmem>>, vector<16x128xbf16>
    %cst = arith.constant dense<0.000000e+00> : vector<8x128xf32>
    %3 = tpu.matmul %1, %2, %cst {dimension_numbers = #tpu.dot_dimension_numbers<[1], [0], [0], [1], [0, 0, 1, 1], [], []>} : vector<8x16xbf16>, vector<16x128xbf16>, vector<8x128xf32> -> vector<8x128xf32>
    %c0_3 = arith.constant 0 : index
    %c0_4 = arith.constant 0 : index
    %4 = vector.load %arg3[%c0_3, %c0_4] : memref<3x128xf32, #tpu.memory_space<vmem>>, vector<1x128xf32>
    %5 = vector.broadcast %4 : vector<1x128xf32> to vector<8x128xf32>
    %6 = arith.addf %3, %5 : vector<8x128xf32>
    %cst_5 = arith.constant dense<0.000000e+00> : vector<8xf32>
    %7 = vector.multi_reduction <add>, %6, %cst_5 [1] : vector<8x128xf32> to vector<8xf32>
    %8 = vector.shape_cast %7 : vector<8xf32> to vector<8x1xf32>
    %9 = arith.mulf %6, %6 : vector<8x128xf32>
    %cst_6 = arith.constant dense<0.000000e+00> : vector<8xf32>
    %10 = vector.multi_reduction <add>, %9, %cst_6 [1] : vector<8x128xf32> to vector<8xf32>
    %11 = vector.shape_cast %10 : vector<8xf32> to vector<8x1xf32>
    %cst_7 = arith.constant 3.125000e-02 : f32
    %12 = vector.broadcast %cst_7 : f32 to vector<8x1xf32>
    %13 = arith.mulf %8, %12 : vector<8x1xf32>
    %cst_8 = arith.constant 3.125000e-02 : f32
    %14 = vector.broadcast %cst_8 : f32 to vector<8x1xf32>
    %15 = arith.mulf %11, %14 : vector<8x1xf32>
    %16 = arith.mulf %13, %13 : vector<8x1xf32>
    %17 = arith.subf %15, %16 : vector<8x1xf32>
    %cst_9 = arith.constant 0.000000e+00 : f32
    %18 = vector.broadcast %cst_9 : f32 to vector<8x1xf32>
    %19 = arith.maximumf %17, %18 : vector<8x1xf32>
    %20 = vector.broadcast %13 : vector<8x1xf32> to vector<8x128xf32>
    %21 = arith.subf %6, %20 : vector<8x128xf32>
    %cst_10 = arith.constant 9.99999974E-6 : f32
    %22 = vector.broadcast %cst_10 : f32 to vector<8x1xf32>
    %23 = arith.addf %19, %22 : vector<8x1xf32>
    %24 = math.rsqrt %23 : vector<8x1xf32>
    %25 = vector.broadcast %24 : vector<8x1xf32> to vector<8x128xf32>
    %26 = arith.mulf %21, %25 : vector<8x128xf32>
    %c1 = arith.constant 1 : index
    %c0_11 = arith.constant 0 : index
    %27 = vector.load %arg3[%c1, %c0_11] : memref<3x128xf32, #tpu.memory_space<vmem>>, vector<1x128xf32>
    %28 = vector.broadcast %27 : vector<1x128xf32> to vector<8x128xf32>
    %29 = arith.mulf %26, %28 : vector<8x128xf32>
    %c2 = arith.constant 2 : index
    %c0_12 = arith.constant 0 : index
    %30 = vector.load %arg3[%c2, %c0_12] : memref<3x128xf32, #tpu.memory_space<vmem>>, vector<1x128xf32>
    %31 = vector.broadcast %30 : vector<1x128xf32> to vector<8x128xf32>
    %32 = arith.addf %29, %31 : vector<8x128xf32>
    %cst_13 = arith.constant 0.000000e+00 : f32
    %33 = vector.broadcast %cst_13 : f32 to vector<8x128xf32>
    %34 = arith.maximumf %32, %33 : vector<8x128xf32>
    %35 = arith.truncf %34 : vector<8x128xf32> to vector<8x128xbf16>
    %c0_14 = arith.constant 0 : index
    %c0_15 = arith.constant 0 : index
    %36 = vector.load %arg4[%c0_14, %c0_15] : memref<128x8xbf16, #tpu.memory_space<vmem>>, vector<128x8xbf16>
    %cst_16 = arith.constant dense<0.000000e+00> : vector<8x8xf32>
    %37 = tpu.matmul %35, %36, %cst_16 {dimension_numbers = #tpu.dot_dimension_numbers<[1], [0], [0], [1], [0, 0, 1, 1], [], []>} : vector<8x128xbf16>, vector<128x8xbf16>, vector<8x8xf32> -> vector<8x8xf32>
    %c0_17 = arith.constant 0 : index
    %c0_18 = arith.constant 0 : index
    %38 = vector.load %arg5[%c0_17, %c0_18] : memref<1x8xf32, #tpu.memory_space<vmem>>, vector<1x8xf32>
    %39 = vector.broadcast %38 : vector<1x8xf32> to vector<8x8xf32>
    %40 = arith.addf %37, %39 : vector<8x8xf32>
    %c0_19 = arith.constant 0 : index
    %c0_20 = arith.constant 0 : index
    %41 = vector.load %arg6[%c0_19, %c0_20] : memref<8x8xf32, #tpu.memory_space<vmem>>, vector<8x8xf32>
    tpu.vector_store %arg6[%c0_19, %c0_20], %40 {strides = array<i32>} : memref<8x8xf32, #tpu.memory_space<vmem>>, vector<8x8xf32>,
    return
  }
  func.func @transform_0(%arg0: i32) -> (i32, i32) {
    %c0_i32 = arith.constant 0 : i32
    %c0_i32_0 = arith.constant 0 : i32
    return %arg0, %c0_i32 : i32, i32
  }
  func.func @transform_1(%arg0: i32) -> (i32, i32) {
    %c0_i32 = arith.constant 0 : i32
    %c0_i32_0 = arith.constant 0 : i32
    %c0_i32_1 = arith.constant 0 : i32
    return %c0_i32, %c0_i32_0 : i32, i32
  }
  func.func @transform_2(%arg0: i32) -> (i32, i32) {
    %c0_i32 = arith.constant 0 : i32
    %c0_i32_0 = arith.constant 0 : i32
    %c0_i32_1 = arith.constant 0 : i32
    return %c0_i32, %c0_i32_0 : i32, i32
  }
  func.func @transform_3(%arg0: i32) -> (i32, i32) {
    %c0_i32 = arith.constant 0 : i32
    %c0_i32_0 = arith.constant 0 : i32
    %c0_i32_1 = arith.constant 0 : i32
    return %c0_i32, %c0_i32_0 : i32, i32
  }
  func.func @transform_4(%arg0: i32) -> (i32, i32) {
    %c0_i32 = arith.constant 0 : i32
    %c0_i32_0 = arith.constant 0 : i32
    %c0_i32_1 = arith.constant 0 : i32
    return %c0_i32, %c0_i32_0 : i32, i32
  }
  func.func @transform_5(%arg0: i32) -> (i32, i32) {
    %c0_i32 = arith.constant 0 : i32
    %c0_i32_0 = arith.constant 0 : i32
    return %arg0, %c0_i32 : i32, i32
  }
}

</mosaic_0001>

<llo_original>
// kernel: tpu_custom_call.1
$region0: #{tpu_custom_call.1}
  #allocation0 [shape = 'u32[]', space=smem, size = 0x4, offset = 0x4, fixed_abs, tag = 'smem constant byte address 0x4 - core index']
  #allocation1 [shape = 'u32[144,128]{1,0:T(1,128)}', space=vmem, size = 0x12000, scoped, tag = 'internal scratch']
  %s0 = inlined_call_operand.vmem [shape: f32[8,16], index: 0, kind: input, shape index: {}]
  %s1 = inlined_call_operand.vmem [shape: bf16[16,128], index: 1, kind: input, shape index: {}]
  %s2 = inlined_call_operand.vmem [shape: f32[3,128], index: 2, kind: input, shape index: {}]
  %s3 = inlined_call_operand.vmem [shape: bf16[128,8], index: 3, kind: input, shape index: {}]
  %s4 = inlined_call_operand.vmem [shape: f32[1,8], index: 4, kind: input, shape index: {}]
  %s5 = inlined_call_operand.hbm [shape: f32[8,8], index: 5, kind: output, shape index: {}]
  %s6 = sld [smem:[#allocation0]]
  $region30: #{tpu_custom_call.1} parent=0
    _
  %s8 = ssub.s32 1, %s6
  %s9 = scalar_select 0, %s8, %s6
  $region1: #{tpu_custom_call.1} parent=0
    #allocation2 [shape = 'u8[4096]{0}', space=vmem, size = 0x1000, scoped, tag = 'output window, operand 0, single buffered']
    #allocation3 [shape = 's32[1]{0}', space=sflag, size = 0x4, scoped, tag = 'scoped memory for tpu_custom_call.1']
    %10 = vsyncpa [#allocation3], 0
    // Predicated region
    $region2: #{tpu_custom_call.1} parent=1 // pred_check
      _
    $region3: #{tpu_custom_call.1} parent=1 // pred_check_branch
      %12 = sbr.rel (0) target = $region5
    $region4: #{tpu_custom_call.1} parent=1 // pred_region
      _
    $region5: #{tpu_custom_call.1} parent=1 // pred_fallthru
      _
    // Predicated region
    $region6: #{tpu_custom_call.1} parent=1 // pred_check
      _
    $region7: #{tpu_custom_call.1} parent=1 // pred_check_branch
      %14 = sbr.rel (0) target = $region9
    $region8: #{tpu_custom_call.1} parent=1 // pred_region
      _
    $region9: #{tpu_custom_call.1} parent=1 // pred_fallthru
      _
    // Predicated region
    $region10: #{tpu_custom_call.1} parent=1 // pred_check
      _
    $region11: #{tpu_custom_call.1} parent=1 // pred_check_branch
      %16 = sbr.rel (0) target = $region13
    $region12: #{tpu_custom_call.1} parent=1 // pred_region
      _
    $region13: #{tpu_custom_call.1} parent=1 // pred_fallthru
      _
    // Predicated region
    $region14: #{tpu_custom_call.1} parent=1 // pred_check
      _
    $region15: #{tpu_custom_call.1} parent=1 // pred_check_branch
      %18 = sbr.rel (0) target = $region17
    $region16: #{tpu_custom_call.1} parent=1 // pred_region
      _
    $region17: #{tpu_custom_call.1} parent=1 // pred_fallthru
      _
    // Predicated region
    $region18: #{tpu_custom_call.1} parent=1 // pred_check
      _
    $region19: #{tpu_custom_call.1} parent=1 // pred_check_branch
      %20 = sbr.rel (0) target = $region21
    $region20: #{tpu_custom_call.1} parent=1 // pred_region
      _
    $region21: #{tpu_custom_call.1} parent=1 // pred_fallthru
      _
    %v22 = vld [vmem:[%s0] sm:$0xff]
    %v23 = vpack.c.bf16 %v22, %v22
    %v24 = vld [vmem:[%s1] sm:$0xf]
    %v25 = vld [vmem:[%s1 + $0x4] sm:$0xf]
    %v26 = vld [vmem:[%s2] sm:$0x1]
    %v27 = vlaneseq
    %v28 = vshrl.u32 %v27, 7
    %v29 = vsub.s32 0, %v28
    %v30 = vrot.slane %v26, %v29
    %v33 = vunpack.c.l.b16 %v24
    %v34 = vunpack.c.l.b16 %v25
    %v35 = vpack.c.b16 %v34, %v33
    %vm37 = vcmask 130048
    %v39 = vsel %vm37, %v23, 0
    %41 = vmatprep.subr.bf16.mxu0 0
    %42 = vmatpush1.bf16.msra.mxu0 0
    %43 = vmatprep.subr.bf16.mxu0 0
    %44 = vmatpush1.bf16.msra.mxu0 0
    %45 = vmatprep.subr.bf16.mxu0 0
    %46 = vmatpush1.bf16.msra.mxu0 0
    %47 = vmatprep.subr.bf16.mxu0 0
    %48 = vmatpush1.bf16.msra.mxu0 0
    %49 = vmatprep.subr.bf16.mxu0 0
    %50 = vmatpush1.bf16.msra.mxu0 0
    %51 = vmatprep.subr.bf16.mxu0 0
    %52 = vmatpush1.bf16.msra.mxu0 0
    %53 = vmatprep.subr.bf16.mxu0 0
    %54 = vmatpush1.bf16.msra.mxu0 0
    %55 = vmatprep.subr.bf16.mxu0 0
    %56 = vmatpush1.bf16.msra.mxu0 %v35
    %57 = vmatprep.subr.bf16.mxu0 0
    %58 = vmatpush2.bf16.msra.mxu0 0
    %59 = vmatprep.subr.bf16.mxu0 0
    %60 = vmatpush2.bf16.msra.mxu0 0
    %61 = vmatprep.subr.bf16.mxu0 0
    %62 = vmatpush2.bf16.msra.mxu0 0
    %63 = vmatprep.subr.bf16.mxu0 0
    %64 = vmatpush2.bf16.msra.mxu0 0
    %65 = vmatprep.subr.bf16.mxu0 0
    %66 = vmatpush2.bf16.msra.mxu0 0
    %67 = vmatprep.subr.bf16.mxu0 0
    %68 = vmatpush2.bf16.msra.mxu0 0
    %69 = vmatprep.subr.bf16.mxu0 0
    %70 = vmatpush2.bf16.msra.mxu0 0
    %71 = vmatprep.subr.bf16.mxu0 0
    %72 = vmatpush2.bf16.msra.mxu0 0
    %73 = vmatprep.mubr.bf16.mxu0 0
    %74 = vmatmul.mubr.bf16.gmra.mxu0 %v39
    %v75 = vpop.f32.mrf.mxu0
    %v76 = vadd.f32 %v30, %v75
    %v77 = vpop.f32.mrf.mxu0
    %v78 = vpop.f32.mrf.mxu0
    %v79 = vpop.f32.mrf.mxu0
    %80 = vdwg.mxu0
    %81 = vadd.xlane.f32.xlu0 %v76
    %v82 = vpop.xlane.xlu0 %81
    %v83 = vmul.f32 %v76, %v76
    %84 = vadd.xlane.f32.xlu0 %v83
    %v85 = vpop.xlane.xlu0 %84
    %v86 = vmul.f32 %v82, 0.03125
    %v87 = vmul.f32 %v85, 0.03125
    %v88 = vmul.f32 %v86, %v86
    %v89 = vsub.f32 %v87, %v88
    %v90 = vmax.f32 %v89, 0.0
    %v91 = vsub.f32 %v76, %v86
    %v92 = vadd.f32 %v90, 1e-05
    %v93 = vrsqrt.pop %v92
    %v94 = vmul.f32 %v91, %v93
    %v95 = vld [vmem:[%s2 + $0x1] sm:$0x1]
    %v96 = vlaneseq
    %v97 = vshrl.u32 %v96, 7
    %v98 = vsub.s32 0, %v97
    %v99 = vrot.slane %v95, %v98
    %v100 = vmul.f32 %v94, %v99
    %v101 = vld [vmem:[%s2 + $0x2] sm:$0x1]
    %v102 = vlaneseq
    %v103 = vshrl.u32 %v102, 7
    %v104 = vsub.s32 0, %v103
    %v105 = vrot.slane %v101, %v104
    %v106 = vadd.f32 %v100, %v105
    %v107 = vmax.f32 %v106, 0.0
    %v108 = vpack.c.bf16 %v107, %v107
    %v109 = vld [vmem:[%s3] sm:$0xf]
    %v110 = vld [vmem:[%s3 + $0x4] sm:$0xf]
    %v111 = vld [vmem:[%s3 + $0x8] sm:$0xf]
    %v112 = vld [vmem:[%s3 + $0xc] sm:$0xf]
    %v113 = vld [vmem:[%s3 + $0x10] sm:$0xf]
    %v114 = vld [vmem:[%s3 + $0x14] sm:$0xf]
    %v115 = vld [vmem:[%s3 + $0x18] sm:$0xf]
    %v116 = vld [vmem:[%s3 + $0x1c] sm:$0xf]
    %v117 = vld [vmem:[%s3 + $0x20] sm:$0xf]
    %v118 = vld [vmem:[%s3 + $0x24] sm:$0xf]
    %v119 = vld [vmem:[%s3 + $0x28] sm:$0xf]
    %v120 = vld [vmem:[%s3 + $0x2c] sm:$0xf]
    %v121 = vld [vmem:[%s3 + $0x30] sm:$0xf]
    %v122 = vld [vmem:[%s3 + $0x34] sm:$0xf]
    %v123 = vld [vmem:[%s3 + $0x38] sm:$0xf]
    %v124 = vld [vmem:[%s3 + $0x3c] sm:$0xf]
    %v125 = vld [vmem:[%s4] sm:$0x1]
    %v127 = vlaneseq
    %v128 = vshrl.u32 %v127, 7
    %v129 = vsub.s32 0, %v128
    %v130 = vrot.slane %v125, %v129
    %v148 = vunpack.c.l.b16 %v109
    %v149 = vunpack.c.l.b16 %v110
    %v150 = vunpack.c.l.b16 %v111
    %v151 = vunpack.c.l.b16 %v112
    %v152 = vunpack.c.l.b16 %v113
    %v153 = vunpack.c.l.b16 %v114
    %v154 = vunpack.c.l.b16 %v115
    %v155 = vunpack.c.l.b16 %v116
    %v156 = vunpack.c.l.b16 %v117
    %v157 = vunpack.c.l.b16 %v118
    %v158 = vunpack.c.l.b16 %v119
    %v159 = vunpack.c.l.b16 %v120
    %v160 = vunpack.c.l.b16 %v121
    %v161 = vunpack.c.l.b16 %v122
    %v162 = vunpack.c.l.b16 %v123
    %v163 = vunpack.c.l.b16 %v124
    %v164 = vpack.c.b16 %v149, %v148
    %v165 = vpack.c.b16 %v151, %v150
    %v166 = vpack.c.b16 %v153, %v152
    %v167 = vpack.c.b16 %v155, %v154
    %v168 = vpack.c.b16 %v157, %v156
    %v169 = vpack.c.b16 %v159, %v158
    %v170 = vpack.c.b16 %v161, %v160
    %v171 = vpack.c.b16 %v163, %v162
    %180 = vmatprep.subr.bf16.mxu0 0
    %181 = vmatpush1.bf16.msra.mxu0 %v171
    %182 = vmatprep.subr.bf16.mxu0 0
    %183 = vmatpush1.bf16.msra.mxu0 %v170
    %184 = vmatprep.subr.bf16.mxu0 0
    %185 = vmatpush1.bf16.msra.mxu0 %v169
    %186 = vmatprep.subr.bf16.mxu0 0
    %187 = vmatpush1.bf16.msra.mxu0 %v168
    %188 = vmatprep.subr.bf16.mxu0 0
    %189 = vmatpush1.bf16.msra.mxu0 %v167
    %190 = vmatprep.subr.bf16.mxu0 0
    %191 = vmatpush1.bf16.msra.mxu0 %v166
    %192 = vmatprep.subr.bf16.mxu0 0
    %193 = vmatpush1.bf16.msra.mxu0 %v165
    %194 = vmatprep.subr.bf16.mxu0 0
    %195 = vmatpush1.bf16.msra.mxu0 %v164
    %196 = vmatprep.subr.bf16.mxu0 0
    %197 = vmatpush2.bf16.msra.mxu0 0
    %198 = vmatprep.subr.bf16.mxu0 0
    %199 = vmatpush2.bf16.msra.mxu0 0
    %200 = vmatprep.subr.bf16.mxu0 0
    %201 = vmatpush2.bf16.msra.mxu0 0
    %202 = vmatprep.subr.bf16.mxu0 0
    %203 = vmatpush2.bf16.msra.mxu0 0
    %204 = vmatprep.subr.bf16.mxu0 0
    %205 = vmatpush2.bf16.msra.mxu0 0
    %206 = vmatprep.subr.bf16.mxu0 0
    %207 = vmatpush2.bf16.msra.mxu0 0
    %208 = vmatprep.subr.bf16.mxu0 0
    %209 = vmatpush2.bf16.msra.mxu0 0
    %210 = vmatprep.subr.bf16.mxu0 0
    %211 = vmatpush2.bf16.msra.mxu0 0
    %212 = vmatprep.mubr.bf16.mxu0 0
    %213 = vmatmul.mubr.bf16.gmra.mxu0 %v108
    %v214 = vpop.f32.mrf.mxu0
    %v215 = vadd.f32 %v130, %v214
    %v216 = vpop.f32.mrf.mxu0
    %v217 = vpop.f32.mrf.mxu0
    %v218 = vpop.f32.mrf.mxu0
    %219 = vdwg.mxu0
    %vm220 = vcmask 64512
    %221 = vst.msk [vmem:[#allocation2] sm:$0xff] %vm220, %v215
    // Predicated region
    $region22: #{tpu_custom_call.1} parent=1 // pred_check
      _
    $region23: #{tpu_custom_call.1} parent=1 // pred_check_branch
      %223 = sbr.rel (0) target = $region25
    $region24: #{tpu_custom_call.1} parent=1 // pred_region
      %s225 = ssub.s32 128, 128
      %226 = vsyncadd [#allocation3], %s225
      %s228 = sshll.u32 [#allocation2], 4
      %s229 = int_to_ptr.vmem [resolvable:$true] %s228
      %231 = dma.vmem_to_hbm [thread:$0]  %s229, 128, %s5, [#allocation3]
    $region25: #{tpu_custom_call.1} parent=1 // pred_fallthru
      _
    // Predicated region
    $region26: #{tpu_custom_call.1} parent=1 // pred_check
      _
    $region27: #{tpu_custom_call.1} parent=1 // pred_check_branch
      %233 = sbr.rel (0) target = $region29
    $region28: #{tpu_custom_call.1} parent=1 // pred_region
      %234 = dma.done [#allocation3], 128
    $region29: #{tpu_custom_call.1} parent=1 // pred_fallthru
      _
    %235 = vsyncpa [#allocation3], 1

</llo_original>
